<compile_context>
chip_gen: v7x
topology: tpu7x:2x2x1
jax: 0.10.0
libtpu: 0.0.40
codegen_flags: <defaults>
</compile_context>

<pallas_src>
import functools

import jax
import jax.numpy as jnp
from jax import lax
from jax.experimental import pallas as pl
from jax.experimental.pallas import tpu as pltpu


def _round_up(x, m):
    return (x + m - 1) // m * m


# ------------------------------ Pallas kernel --------------------------------

def _fused_conv_in_kernel(x_ref, w_ref, b_ref, g_ref, beta_ref, mask_ref, o_ref,
                          *, tap_offsets, lp, inv_count, eps, apply_norm):
    """One grid step = one batch sample (fully fused conv + bias + instance norm).

    x_ref    : (1, C, Lf)   reflection-padded input, spatially flattened (zero tail)
    w_ref    : (OC, K)      conv weight, K = KH*KW*C, tap-major (t*C + c), compute dtype
    b_ref    : (OC, 1) f32  conv bias
    g_ref    : (OC, 1) f32  instance-norm gamma
    beta_ref : (OC, 1) f32  instance-norm beta
    mask_ref : (1, Lp) f32  1.0 where a "wide" output column is a real output position
    o_ref    : (1, OC, Lp)  wide conv(+norm) output, lane-dense (Lp % 128 == 0)
    """
    xs = x_ref[0]                                                  # (C, Lf)

    # im2col patch matrix built in VMEM only: row (t*C + c) is channel c shifted by
    # tap t's flat offset.  Pure lane-offset slices + sublane concatenate (no HBM).
    patches = jnp.concatenate([xs[:, d:d + lp] for d in tap_offsets], axis=0)  # (K, Lp)
    patches = patches.astype(w_ref.dtype)                          # bf16 (or f32) MXU operands

    # Conv as a single lane-dense GEMM with f32 accumulation.
    y = jnp.dot(w_ref[...], patches, preferred_element_type=jnp.float32)       # (OC, Lp)
    y = y + b_ref[...]                                             # bias (f32 epilogue)

    if apply_norm:
        mask = mask_ref[...]                                       # (1, Lp)
        mean = jnp.sum(y * mask, axis=1, keepdims=True) * inv_count
        cent = (y - mean) * mask
        var = jnp.sum(cent * cent, axis=1, keepdims=True) * inv_count   # biased, like PyTorch
        y = cent * lax.rsqrt(var + eps) * g_ref[...] + beta_ref[...]

    o_ref[0] = y.astype(o_ref.dtype)


# ------------------------------ host-side glue --------------------------------

def prepare_conv_layer_params(conv_w, conv_b, gamma, beta, *, compute_dtype=jnp.bfloat16):
    """Per-layer parameter prep, hoisted out of the forward pass (done once).

    Returns (w_mat, bias, gamma, beta) with w_mat[oc, t*C + c] = conv_w[oc, c, i, j],
    t = i*KW + j, cast to the MXU compute dtype."""
    oc, c_in, kh, kw = conv_w.shape
    w_mat = jnp.asarray(conv_w).transpose(0, 2, 3, 1).reshape(oc, kh * kw * c_in)
    w_mat = w_mat.astype(compute_dtype)
    return (w_mat,
            jnp.asarray(conv_b, jnp.float32).reshape(oc, 1),
            jnp.asarray(gamma, jnp.float32).reshape(oc, 1),
            jnp.asarray(beta, jnp.float32).reshape(oc, 1))


@functools.partial(jax.jit, static_argnames=("kernel_size", "stride", "norm", "eps"))
def conv_layer_forward(x, w_mat, bias, gamma, beta, *, kernel_size, stride=1,
                       norm="instance", eps=1e-5):
    """Forward pass of ConvLayer.  x: (N, C_in, H, W) float32 (NCHW)."""
    if norm == "batch":
        # TODO(synk): norm == 'batch' (BatchNorm2d with running stats) not implemented.
        raise NotImplementedError("norm='batch' is not implemented")

    kh = kw = kernel_size
    oc, k = w_mat.shape
    c_in = k // (kh * kw)
    n, c, h, w = x.shape
    assert c == c_in, (c, c_in)
    pad = kernel_size // 2

    # Reflection pad (matches nn.ReflectionPad2d), then flatten spatial row-major.
    x_pad = x if pad == 0 else jnp.pad(
        x, ((0, 0), (0, 0), (pad, pad), (pad, pad)), mode="reflect")
    hp, wp = h + 2 * pad, w + 2 * pad
    oh = (hp - kh) // stride + 1
    ow = (wp - kw) // stride + 1
    oh1 = hp - kh + 1                        # stride-1 ("wide") output height
    lp = _round_up(oh1 * wp, 128)            # lane-dense wide-output width
    d_max = (kh - 1) * wp + (kw - 1)         # largest tap offset in flat coords
    lf = _round_up(d_max + lp, 128)          # flattened input length incl. zero tail

    x_flat = x_pad.reshape(n, c_in, hp * wp)
    x_flat = jnp.pad(x_flat, ((0, 0), (0, 0), (0, lf - hp * wp)))

    # Validity mask over wide-output columns (handles padding overhang and stride).
    p = jnp.arange(lp, dtype=jnp.int32)
    row, col = p // wp, p % wp
    valid = ((row % stride == 0) & (col % stride == 0)
             & (row // stride < oh) & (col // stride < ow))
    mask = valid.astype(jnp.float32).reshape(1, lp)

    tap_offsets = tuple(i * wp + j for i in range(kh) for j in range(kw))
    kernel = functools.partial(
        _fused_conv_in_kernel,
        tap_offsets=tap_offsets, lp=lp, inv_count=1.0 / float(oh * ow),
        eps=float(eps), apply_norm=(norm != "None"))

    # Per-step VMEM footprint (double-buffered blocks + in-kernel patch matrix).
    vmem_est = 4 * (2 * c_in * lf + 2 * oc * lp + 2 * k * lp + oc * k) + (2 << 20)
    cparams = {"dimension_semantics": ("parallel",)}      # megacore over batch on v7x
    if vmem_est > 24 * (1 << 20):
        # TODO(synk): for very large spatial maps, tile the flat axis and accumulate
        #             the norm statistics across tiles instead of raising the limit.
        cparams["vmem_limit_bytes"] = int(min(vmem_est, 100 * (1 << 20)))

    out_wide = pl.pallas_call(
        kernel,
        out_shape=jax.ShapeDtypeStruct((n, oc, lp), jnp.float32),
        grid_spec=pltpu.PrefetchScalarGridSpec(
            num_scalar_prefetch=0,
            grid=(n,),
            in_specs=[
                pl.BlockSpec((1, c_in, lf), lambda b: (b, 0, 0)),
                pl.BlockSpec((oc, k), lambda b: (0, 0)),
                pl.BlockSpec((oc, 1), lambda b: (0, 0)),
                pl.BlockSpec((oc, 1), lambda b: (0, 0)),
                pl.BlockSpec((oc, 1), lambda b: (0, 0)),
                pl.BlockSpec((1, lp), lambda b: (0, 0)),
            ],
            out_specs=pl.BlockSpec((1, oc, lp), lambda b: (b, 0, 0)),
        ),
        compiler_params=pltpu.CompilerParams(**cparams),
    )(x_flat, w_mat, bias, gamma, beta, mask)

    # Un-widen: drop padded-column overhang and apply the output stride (cheap slice,
    # no transpose — channel/spatial layout is already NCHW-compatible).
    # TODO(synk): stride > 1 computes the stride-1 wide conv then subsamples (s^2 extra
    #             MXU work); a phase-decomposed input would avoid it.
    out = out_wide[:, :, :oh1 * wp].reshape(n, oc, oh1, wp)
    out = out[:, :, ::stride, ::stride][:, :, :oh, :ow]
    return out


# ------------------------- pure-JAX reference ---------------------------------

def _reference(x, conv_w, conv_b, gamma, beta, *, stride, eps=1e-5):
    pad = conv_w.shape[2] // 2
    x_pad = x if pad == 0 else jnp.pad(
        x, ((0, 0), (0, 0), (pad, pad), (pad, pad)), mode="reflect")
    y = lax.conv_general_dilated(
        x_pad, conv_w, window_strides=(stride, stride), padding="VALID",
        dimension_numbers=("NCHW", "OIHW", "NCHW"))
    y = y + conv_b.reshape(1, -1, 1, 1)
    mean = jnp.mean(y, axis=(2, 3), keepdims=True)
    var = jnp.mean((y - mean) ** 2, axis=(2, 3), keepdims=True)
    yhat = (y - mean) * lax.rsqrt(var + eps)
    return yhat * gamma.reshape(1, -1, 1, 1) + beta.reshape(1, -1, 1, 1)


# ---------------------------------- driver ------------------------------------

if __name__ == "__main__":
    # ConvLayer(in_channels=4, out_channels=8, kernel_size=3, stride=1, norm='instance')
    N, C_IN, H, W = 2, 4, 16, 16
    C_OUT, KSIZE, STRIDE = 8, 3, 1

    key = jax.random.PRNGKey(0)
    kx, kw_, kb, kg, kbt = jax.random.split(key, 5)
    x = jax.random.normal(kx, (N, C_IN, H, W), dtype=jnp.float32)
    conv_w = 0.1 * jax.random.normal(kw_, (C_OUT, C_IN, KSIZE, KSIZE), dtype=jnp.float32)
    conv_b = 0.1 * jax.random.normal(kb, (C_OUT,), dtype=jnp.float32)
    gamma = 1.0 + 0.1 * jax.random.normal(kg, (C_OUT,), dtype=jnp.float32)
    beta = 0.1 * jax.random.normal(kbt, (C_OUT,), dtype=jnp.float32)

    ref = _reference(x, conv_w, conv_b, gamma, beta, stride=STRIDE)

    # f32 MXU operands: tight correctness check.
    p32 = prepare_conv_layer_params(conv_w, conv_b, gamma, beta, compute_dtype=jnp.float32)
    out32 = conv_layer_forward(x, *p32, kernel_size=KSIZE, stride=STRIDE, norm="instance")
    out32 = jax.block_until_ready(out32)
    assert out32.shape == (N, C_OUT, H, W), out32.shape
    assert jnp.allclose(out32, ref, atol=1e-3, rtol=1e-3), float(jnp.max(jnp.abs(out32 - ref)))

    # bf16 MXU operands (f32 accumulation) — the recommended fast path on v5e/v6e/v7x.
    pbf = prepare_conv_layer_params(conv_w, conv_b, gamma, beta, compute_dtype=jnp.bfloat16)
    outbf = conv_layer_forward(x, *pbf, kernel_size=KSIZE, stride=STRIDE, norm="instance")
    outbf = jax.block_until_ready(outbf)
    assert outbf.shape == (N, C_OUT, H, W), outbf.shape
    assert jnp.allclose(outbf, ref, atol=3e-2, rtol=3e-2), float(jnp.max(jnp.abs(outbf - ref)))

    print("KERNEL_OK")
</pallas_src>

<mosaic_0001>
module attributes {stable_mosaic.version = 11 : i64} {
  func.func @_fused_conv_in_kernel(%arg0: i32, %arg1: memref<1x4x512xf32, #tpu.memory_space<vmem>>, %arg2: memref<8x36xf32, #tpu.memory_space<vmem>>, %arg3: memref<8x1xf32, #tpu.memory_space<vmem>>, %arg4: memref<8x1xf32, #tpu.memory_space<vmem>>, %arg5: memref<8x1xf32, #tpu.memory_space<vmem>>, %arg6: memref<1x384xf32, #tpu.memory_space<vmem>>, %arg7: memref<1x8x384xf32, #tpu.memory_space<vmem>>) attributes {dimension_semantics = [#tpu.dimension_semantics<parallel>], iteration_bounds = array<i64: 2>, scalar_prefetch = 0 : i64, scratch_operands = 0 : i64, tpu.core_type = #tpu.core_type<tc>, window_params = [{transform_indices = @transform_0, window_bounds = array<i64: 1, 4, 512>}, {pipeline_mode = #tpu.pipeline_mode<synchronous>, transform_indices = @transform_1, window_bounds = array<i64: 8, 36>}, {pipeline_mode = #tpu.pipeline_mode<synchronous>, transform_indices = @transform_2, window_bounds = array<i64: 8, 1>}, {pipeline_mode = #tpu.pipeline_mode<synchronous>, transform_indices = @transform_3, window_bounds = array<i64: 8, 1>}, {pipeline_mode = #tpu.pipeline_mode<synchronous>, transform_indices = @transform_4, window_bounds = array<i64: 8, 1>}, {pipeline_mode = #tpu.pipeline_mode<synchronous>, transform_indices = @transform_5, window_bounds = array<i64: 1, 384>}, {transform_indices = @transform_6, window_bounds = array<i64: 1, 8, 384>}]} {
    %c0 = arith.constant 0 : index
    %c0_0 = arith.constant 0 : index
    %c0_1 = arith.constant 0 : index
    %0 = vector.load %arg1[%c0, %c0_0, %c0_1] : memref<1x4x512xf32, #tpu.memory_space<vmem>>, vector<1x4x512xf32>
    %1 = vector.shape_cast %0 : vector<1x4x512xf32> to vector<4x512xf32>
    %2 = vector.extract_strided_slice %1 {offsets = [0, 0], sizes = [4, 384], strides = [1, 1]} : vector<4x512xf32> to vector<4x384xf32>
    %3 = vector.extract_strided_slice %1 {offsets = [0, 1], sizes = [4, 384], strides = [1, 1]} : vector<4x512xf32> to vector<4x384xf32>
    %4 = vector.extract_strided_slice %1 {offsets = [0, 2], sizes = [4, 384], strides = [1, 1]} : vector<4x512xf32> to vector<4x384xf32>
    %5 = vector.extract_strided_slice %1 {offsets = [0, 18], sizes = [4, 384], strides = [1, 1]} : vector<4x512xf32> to vector<4x384xf32>
    %6 = vector.extract_strided_slice %1 {offsets = [0, 19], sizes = [4, 384], strides = [1, 1]} : vector<4x512xf32> to vector<4x384xf32>
    %7 = vector.extract_strided_slice %1 {offsets = [0, 20], sizes = [4, 384], strides = [1, 1]} : vector<4x512xf32> to vector<4x384xf32>
    %8 = vector.extract_strided_slice %1 {offsets = [0, 36], sizes = [4, 384], strides = [1, 1]} : vector<4x512xf32> to vector<4x384xf32>
    %9 = vector.extract_strided_slice %1 {offsets = [0, 37], sizes = [4, 384], strides = [1, 1]} : vector<4x512xf32> to vector<4x384xf32>
    %10 = vector.extract_strided_slice %1 {offsets = [0, 38], sizes = [4, 384], strides = [1, 1]} : vector<4x512xf32> to vector<4x384xf32>
    %11 = tpu.concatenate %2, %3, %4, %5, %6, %7, %8, %9, %10 in 0 : vector<4x384xf32>, vector<4x384xf32>, vector<4x384xf32>, vector<4x384xf32>, vector<4x384xf32>, vector<4x384xf32>, vector<4x384xf32>, vector<4x384xf32>, vector<4x384xf32> -> vector<36x384xf32>
    %c0_2 = arith.constant 0 : index
    %c0_3 = arith.constant 0 : index
    %12 = vector.load %arg2[%c0_2, %c0_3] : memref<8x36xf32, #tpu.memory_space<vmem>>, vector<8x36xf32>
    %cst = arith.constant dense<0.000000e+00> : vector<8x384xf32>
    %13 = tpu.matmul %12, %11, %cst {dimension_numbers = #tpu.dot_dimension_numbers<[1], [0], [0], [1], [0, 0, 1, 1], [], []>} : vector<8x36xf32>, vector<36x384xf32>, vector<8x384xf32> -> vector<8x384xf32>
    %c0_4 = arith.constant 0 : index
    %c0_5 = arith.constant 0 : index
    %14 = vector.load %arg3[%c0_4, %c0_5] : memref<8x1xf32, #tpu.memory_space<vmem>>, vector<8x1xf32>
    %15 = vector.broadcast %14 : vector<8x1xf32> to vector<8x384xf32>
    %16 = arith.addf %13, %15 : vector<8x384xf32>
    %c0_6 = arith.constant 0 : index
    %c0_7 = arith.constant 0 : index
    %17 = vector.load %arg6[%c0_6, %c0_7] : memref<1x384xf32, #tpu.memory_space<vmem>>, vector<1x384xf32>
    %18 = vector.broadcast %17 : vector<1x384xf32> to vector<8x384xf32>
    %19 = arith.mulf %16, %18 : vector<8x384xf32>
    %cst_8 = arith.constant dense<0.000000e+00> : vector<8xf32>
    %20 = vector.multi_reduction <add>, %19, %cst_8 [1] : vector<8x384xf32> to vector<8xf32>
    %21 = vector.shape_cast %20 : vector<8xf32> to vector<8x1xf32>
    %cst_9 = arith.constant 3.906250e-03 : f32
    %22 = vector.broadcast %cst_9 : f32 to vector<8x1xf32>
    %23 = arith.mulf %21, %22 : vector<8x1xf32>
    %24 = vector.broadcast %23 : vector<8x1xf32> to vector<8x384xf32>
    %25 = arith.subf %16, %24 : vector<8x384xf32>
    %26 = vector.broadcast %17 : vector<1x384xf32> to vector<8x384xf32>
    %27 = arith.mulf %25, %26 : vector<8x384xf32>
    %28 = arith.mulf %27, %27 : vector<8x384xf32>
    %cst_10 = arith.constant dense<0.000000e+00> : vector<8xf32>
    %29 = vector.multi_reduction <add>, %28, %cst_10 [1] : vector<8x384xf32> to vector<8xf32>
    %30 = vector.shape_cast %29 : vector<8xf32> to vector<8x1xf32>
    %cst_11 = arith.constant 3.906250e-03 : f32
    %31 = vector.broadcast %cst_11 : f32 to vector<8x1xf32>
    %32 = arith.mulf %30, %31 : vector<8x1xf32>
    %cst_12 = arith.constant 9.99999974E-6 : f32
    %33 = vector.broadcast %cst_12 : f32 to vector<8x1xf32>
    %34 = arith.addf %32, %33 : vector<8x1xf32>
    %35 = math.rsqrt %34 : vector<8x1xf32>
    %36 = vector.broadcast %35 : vector<8x1xf32> to vector<8x384xf32>
    %37 = arith.mulf %27, %36 : vector<8x384xf32>
    %c0_13 = arith.constant 0 : index
    %c0_14 = arith.constant 0 : index
    %38 = vector.load %arg4[%c0_13, %c0_14] : memref<8x1xf32, #tpu.memory_space<vmem>>, vector<8x1xf32>
    %39 = vector.broadcast %38 : vector<8x1xf32> to vector<8x384xf32>
    %40 = arith.mulf %37, %39 : vector<8x384xf32>
    %c0_15 = arith.constant 0 : index
    %c0_16 = arith.constant 0 : index
    %41 = vector.load %arg5[%c0_15, %c0_16] : memref<8x1xf32, #tpu.memory_space<vmem>>, vector<8x1xf32>
    %42 = vector.broadcast %41 : vector<8x1xf32> to vector<8x384xf32>
    %43 = arith.addf %40, %42 : vector<8x384xf32>
    %c0_17 = arith.constant 0 : index
    %c0_18 = arith.constant 0 : index
    %c0_19 = arith.constant 0 : index
    %44 = vector.load %arg7[%c0_17, %c0_18, %c0_19] : memref<1x8x384xf32, #tpu.memory_space<vmem>>, vector<1x8x384xf32>
    %45 = vector.shape_cast %44 : vector<1x8x384xf32> to vector<8x384xf32>
    %46 = vector.shape_cast %43 : vector<8x384xf32> to vector<1x8x384xf32>
    tpu.vector_store %arg7[%c0_17, %c0_18, %c0_19], %46 {strides = array<i32>} : memref<1x8x384xf32, #tpu.memory_space<vmem>>, vector<1x8x384xf32>,
    return
  }
  func.func @transform_0(%arg0: i32) -> (i32, i32, i32) {
    %c0_i32 = arith.constant 0 : i32
    %c0_i32_0 = arith.constant 0 : i32
    %c0_i32_1 = arith.constant 0 : i32
    return %arg0, %c0_i32, %c0_i32_0 : i32, i32, i32
  }
  func.func @transform_1(%arg0: i32) -> (i32, i32) {
    %c0_i32 = arith.constant 0 : i32
    %c0_i32_0 = arith.constant 0 : i32
    %c0_i32_1 = arith.constant 0 : i32
    return %c0_i32, %c0_i32_0 : i32, i32
  }
  func.func @transform_2(%arg0: i32) -> (i32, i32) {
    %c0_i32 = arith.constant 0 : i32
    %c0_i32_0 = arith.constant 0 : i32
    %c0_i32_1 = arith.constant 0 : i32
    return %c0_i32, %c0_i32_0 : i32, i32
  }
  func.func @transform_3(%arg0: i32) -> (i32, i32) {
    %c0_i32 = arith.constant 0 : i32
    %c0_i32_0 = arith.constant 0 : i32
    %c0_i32_1 = arith.constant 0 : i32
    return %c0_i32, %c0_i32_0 : i32, i32
  }
  func.func @transform_4(%arg0: i32) -> (i32, i32) {
    %c0_i32 = arith.constant 0 : i32
    %c0_i32_0 = arith.constant 0 : i32
    %c0_i32_1 = arith.constant 0 : i32
    return %c0_i32, %c0_i32_0 : i32, i32
  }
  func.func @transform_5(%arg0: i32) -> (i32, i32) {
    %c0_i32 = arith.constant 0 : i32
    %c0_i32_0 = arith.constant 0 : i32
    %c0_i32_1 = arith.constant 0 : i32
    return %c0_i32, %c0_i32_0 : i32, i32
  }
  func.func @transform_6(%arg0: i32) -> (i32, i32, i32) {
    %c0_i32 = arith.constant 0 : i32
    %c0_i32_0 = arith.constant 0 : i32
    %c0_i32_1 = arith.constant 0 : i32
    return %arg0, %c0_i32, %c0_i32_0 : i32, i32, i32
  }
}

</mosaic_0001>

<llo_original>
// kernel: conv_layer_forward.1
$region0: #{conv_layer_forward.1}
  #allocation0 [shape = 'u32[]', space=smem, size = 0x4, offset = 0x4, fixed_abs, tag = 'smem constant byte address 0x4 - core index']
  #allocation1 [shape = 'u32[144,128]{1,0:T(1,128)}', space=vmem, size = 0x12000, scoped, tag = 'internal scratch']
  %s0 = inlined_call_operand.vmem [shape: f32[2,4,512], index: 0, kind: input, shape index: {}]
  %s1 = inlined_call_operand.vmem [shape: f32[8,36], index: 1, kind: input, shape index: {}]
  %s2 = inlined_call_operand.vmem [shape: f32[8,1], index: 2, kind: input, shape index: {}]
  %s3 = inlined_call_operand.vmem [shape: f32[8,1], index: 3, kind: input, shape index: {}]
  %s4 = inlined_call_operand.vmem [shape: f32[8,1], index: 4, kind: input, shape index: {}]
  %s5 = inlined_call_operand.vmem [shape: f32[1,384], index: 5, kind: input, shape index: {}]
  %s6 = inlined_call_operand.vmem [shape: f32[2,8,384], index: 6, kind: output, shape index: {}]
  %s7 = sld [smem:[#allocation0]]
  $region57: #{conv_layer_forward.1} parent=0
    _
  %s9 = ssub.s32 1, %s7
  %s10 = scalar_select 0, %s9, %s7
  loop: start=0, step=1, limit=4
  $region2: #{conv_layer_forward.1} parent=0 // loop_pre_header
    _
  $region3: #{conv_layer_forward.1} parent=0 // loop_header
    %s12 = sphi 0, %s16
    %p13 = scmp.ge.s32.totalorder %s12, 4
    %s22 = sphi 0, %s24
    %s25 = sphi 0, %s22
    %s26 = sphi 0, %s25
    %s42 = sphi 0, %s26
    %s46 = sphi 0, %s46
    %s48 = sphi 0, %s46
    %s49 = sphi 0, %s48
    %s63 = sphi 0, %s49
    %s67 = sphi 0, %s67
    %s69 = sphi 0, %s67
    %s70 = sphi 0, %s69
    %s84 = sphi 0, %s70
    %s88 = sphi 0, %s88
    %s90 = sphi 0, %s88
    %s91 = sphi 0, %s90
    %s105 = sphi 0, %s91
    %s109 = sphi 0, %s109
    %s111 = sphi 0, %s109
    %s112 = sphi 0, %s111
    %s126 = sphi 0, %s112
    %s130 = sphi 0, %s130
    %s132 = sphi 0, %s130
    %s133 = sphi 0, %s132
    %s147 = sphi 0, %s133
    %s153 = sphi 0, %s155
    %s156 = sphi 0, %s153
    %s157 = sphi 0, %s156
    %s173 = sphi 0, %s157
  $region4: #{conv_layer_forward.1} parent=0 // loop_header_branch
    %15 = sbr.rel (%p13) target = $region8
  $region5: #{conv_layer_forward.1} parent=0 // loop_body
    %s17 = ssub.s32 %s12, 1
    %s18 = ssub.s32 %s12, 2
    %s19 = sadd.s32 %s12, 1
    %s20 = ssub.s32 %s12, %s19
    %p21 = scmp.eq.s32.totalorder %s20, 0
    %s23 = sadd.s32 %s22, 1
    %s24 = scalar_select %p21, %s22, %s23
    %p27 = pneg %p21
    %p28 = scmp.eq.s32.totalorder %s12, 1
    %p29 = por %p27, %p28
    %p30 = scmp.ne.s32.totalorder %s22, %s25
    %p31 = scmp.eq.s32.totalorder %s12, 0
    %p32 = por %p30, %p31
    %p33 = scmp.ne.s32.totalorder %s22, %s25
    %p34 = scmp.eq.s32.totalorder %s17, 1
    %p35 = por %p33, %p34
    %p36 = scmp.ne.s32.totalorder %s25, %s26
    %p37 = scmp.eq.s32.totalorder %s17, 0
    %p38 = por %p36, %p37
    %p39 = scmp.ne.s32.totalorder %s25, %s26
    %p40 = scmp.eq.s32.totalorder %s18, 1
    %p41 = por %p39, %p40
    %p43 = scmp.ne.s32.totalorder %s26, %s42
    %p44 = scmp.eq.s32.totalorder %s18, 0
    %p45 = por %p43, %p44
    %s47 = sadd.s32 %s46, 1
    %p50 = scmp.eq.s32.totalorder %s12, 1
    %p51 = scmp.ne.s32.totalorder %s46, %s48
    %p52 = scmp.eq.s32.totalorder %s12, 0
    %p53 = por %p51, %p52
    %p54 = scmp.ne.s32.totalorder %s46, %s48
    %p55 = scmp.eq.s32.totalorder %s17, 1
    %p56 = por %p54, %p55
    %p57 = scmp.ne.s32.totalorder %s48, %s49
    %p58 = scmp.eq.s32.totalorder %s17, 0
    %p59 = por %p57, %p58
    %p60 = scmp.ne.s32.totalorder %s48, %s49
    %p61 = scmp.eq.s32.totalorder %s18, 1
    %p62 = por %p60, %p61
    %p64 = scmp.ne.s32.totalorder %s49, %s63
    %p65 = scmp.eq.s32.totalorder %s18, 0
    %p66 = por %p64, %p65
    %s68 = sadd.s32 %s67, 1
    %p71 = scmp.eq.s32.totalorder %s12, 1
    %p72 = scmp.ne.s32.totalorder %s67, %s69
    %p73 = scmp.eq.s32.totalorder %s12, 0
    %p74 = por %p72, %p73
    %p75 = scmp.ne.s32.totalorder %s67, %s69
    %p76 = scmp.eq.s32.totalorder %s17, 1
    %p77 = por %p75, %p76
    %p78 = scmp.ne.s32.totalorder %s69, %s70
    %p79 = scmp.eq.s32.totalorder %s17, 0
    %p80 = por %p78, %p79
    %p81 = scmp.ne.s32.totalorder %s69, %s70
    %p82 = scmp.eq.s32.totalorder %s18, 1
    %p83 = por %p81, %p82
    %p85 = scmp.ne.s32.totalorder %s70, %s84
    %p86 = scmp.eq.s32.totalorder %s18, 0
    %p87 = por %p85, %p86
    %s89 = sadd.s32 %s88, 1
    %p92 = scmp.eq.s32.totalorder %s12, 1
    %p93 = scmp.ne.s32.totalorder %s88, %s90
    %p94 = scmp.eq.s32.totalorder %s12, 0
    %p95 = por %p93, %p94
    %p96 = scmp.ne.s32.totalorder %s88, %s90
    %p97 = scmp.eq.s32.totalorder %s17, 1
    %p98 = por %p96, %p97
    %p99 = scmp.ne.s32.totalorder %s90, %s91
    %p100 = scmp.eq.s32.totalorder %s17, 0
    %p101 = por %p99, %p100
    %p102 = scmp.ne.s32.totalorder %s90, %s91
    %p103 = scmp.eq.s32.totalorder %s18, 1
    %p104 = por %p102, %p103
    %p106 = scmp.ne.s32.totalorder %s91, %s105
    %p107 = scmp.eq.s32.totalorder %s18, 0
    %p108 = por %p106, %p107
    %s110 = sadd.s32 %s109, 1
    %p113 = scmp.eq.s32.totalorder %s12, 1
    %p114 = scmp.ne.s32.totalorder %s109, %s111
    %p115 = scmp.eq.s32.totalorder %s12, 0
    %p116 = por %p114, %p115
    %p117 = scmp.ne.s32.totalorder %s109, %s111
    %p118 = scmp.eq.s32.totalorder %s17, 1
    %p119 = por %p117, %p118
    %p120 = scmp.ne.s32.totalorder %s111, %s112
    %p121 = scmp.eq.s32.totalorder %s17, 0
    %p122 = por %p120, %p121
    %p123 = scmp.ne.s32.totalorder %s111, %s112
    %p124 = scmp.eq.s32.totalorder %s18, 1
    %p125 = por %p123, %p124
    %p127 = scmp.ne.s32.totalorder %s112, %s126
    %p128 = scmp.eq.s32.totalorder %s18, 0
    %p129 = por %p127, %p128
    %s131 = sadd.s32 %s130, 1
    %p134 = scmp.eq.s32.totalorder %s12, 1
    %p135 = scmp.ne.s32.totalorder %s130, %s132
    %p136 = scmp.eq.s32.totalorder %s12, 0
    %p137 = por %p135, %p136
    %p138 = scmp.ne.s32.totalorder %s130, %s132
    %p139 = scmp.eq.s32.totalorder %s17, 1
    %p140 = por %p138, %p139
    %p141 = scmp.ne.s32.totalorder %s132, %s133
    %p142 = scmp.eq.s32.totalorder %s17, 0
    %p143 = por %p141, %p142
    %p144 = scmp.ne.s32.totalorder %s132, %s133
    %p145 = scmp.eq.s32.totalorder %s18, 1
    %p146 = por %p144, %p145
    %p148 = scmp.ne.s32.totalorder %s133, %s147
    %p149 = scmp.eq.s32.totalorder %s18, 0
    %p150 = por %p148, %p149
    %s151 = ssub.s32 %s12, %s19
    %p152 = scmp.eq.s32.totalorder %s151, 0
    %s154 = sadd.s32 %s153, 1
    %s155 = scalar_select %p152, %s153, %s154
    %p158 = pneg %p152
    %p159 = scmp.eq.s32.totalorder %s12, 1
    %p160 = por %p158, %p159
    %p161 = scmp.ne.s32.totalorder %s153, %s156
    %p162 = scmp.eq.s32.totalorder %s12, 0
    %p163 = por %p161, %p162
    %p164 = scmp.ne.s32.totalorder %s153, %s156
    %p165 = scmp.eq.s32.totalorder %s17, 1
    %p166 = por %p164, %p165
    %p167 = scmp.ne.s32.totalorder %s156, %s157
    %p168 = scmp.eq.s32.totalorder %s17, 0
    %p169 = por %p167, %p168
    %p170 = scmp.ne.s32.totalorder %s156, %s157
    %p171 = scmp.eq.s32.totalorder %s18, 1
    %p172 = por %p170, %p171
    %p174 = scmp.ne.s32.totalorder %s157, %s173
    %p175 = scmp.eq.s32.totalorder %s18, 0
    %p176 = por %p174, %p175
    %p177 = scmp.le.s32.totalorder 1, %s12
    %p178 = scmp.lt.s32.totalorder %s12, 3
    %p179 = pnand %p177, %p178
    %p180 = pneg %p179
    // Predicated region
    $region9: #{conv_layer_forward.1} parent=5 // pred_check
      _
    $region10: #{conv_layer_forward.1} parent=5 // pred_check_branch
      %182 = sbr.rel (%p179) target = $region12
    $region11: #{conv_layer_forward.1} parent=5 // pred_region
      %s183 = ssub.s32 %s12, 1
      // Predicated region
      $region13: #{conv_layer_forward.1} parent=11 // pred_check
        %p184 = pneg %p59
      $region14: #{conv_layer_forward.1} parent=11 // pred_check_branch
        %186 = sbr.rel (%p184) target = $region16
      $region15: #{conv_layer_forward.1} parent=11 // pred_region
        _
      $region16: #{conv_layer_forward.1} parent=11 // pred_fallthru
        _
      // Predicated region
      $region17: #{conv_layer_forward.1} parent=11 // pred_check
        %p187 = pneg %p80
      $region18: #{conv_layer_forward.1} parent=11 // pred_check_branch
        %189 = sbr.rel (%p187) target = $region20
      $region19: #{conv_layer_forward.1} parent=11 // pred_region
        _
      $region20: #{conv_layer_forward.1} parent=11 // pred_fallthru
        _
      // Predicated region
      $region21: #{conv_layer_forward.1} parent=11 // pred_check
        %p190 = pneg %p101
      $region22: #{conv_layer_forward.1} parent=11 // pred_check_branch
        %192 = sbr.rel (%p190) target = $region24
      $region23: #{conv_layer_forward.1} parent=11 // pred_region
        _
      $region24: #{conv_layer_forward.1} parent=11 // pred_fallthru
        _
      // Predicated region
      $region25: #{conv_layer_forward.1} parent=11 // pred_check
        %p193 = pneg %p122
      $region26: #{conv_layer_forward.1} parent=11 // pred_check_branch
        %195 = sbr.rel (%p193) target = $region28
      $region27: #{conv_layer_forward.1} parent=11 // pred_region
        _
      $region28: #{conv_layer_forward.1} parent=11 // pred_fallthru
        _
      // Predicated region
      $region29: #{conv_layer_forward.1} parent=11 // pred_check
        %p196 = pneg %p143
      $region30: #{conv_layer_forward.1} parent=11 // pred_check_branch
        %198 = sbr.rel (%p196) target = $region32
      $region31: #{conv_layer_forward.1} parent=11 // pred_region
        _
      $region32: #{conv_layer_forward.1} parent=11 // pred_fallthru
        _
    $region12: #{conv_layer_forward.1} parent=5 // pred_fallthru
      _
    %p199 = scmp.lt.s32.totalorder %s12, 2
    // Predicated region
    $region33: #{conv_layer_forward.1} parent=5 // pred_check
      %p200 = pneg %p199
    $region34: #{conv_layer_forward.1} parent=5 // pred_check_branch
      %202 = sbr.rel (%p200) target = $region36
    $region35: #{conv_layer_forward.1} parent=5 // pred_region
      // Predicated region
      $region37: #{conv_layer_forward.1} parent=35 // pred_check
        %p203 = pneg %p32
      $region38: #{conv_layer_forward.1} parent=35 // pred_check_branch
        %205 = sbr.rel (%p203) target = $region40
      $region39: #{conv_layer_forward.1} parent=35 // pred_region
        %p206 = scmp.lt.s32.totalorder %s12, 1
        %s207 = scalar_select %p206, %s12, 1
        %s208 = smul.addr %s207, 4
        %s209 = smul.addr %s208, 4
        %s210 = scalar_lea.vmem %s0, %s209
      $region40: #{conv_layer_forward.1} parent=35 // pred_fallthru
        _
    $region36: #{conv_layer_forward.1} parent=5 // pred_fallthru
      _
    %p211 = scmp.le.s32.totalorder 1, %s12
    %p212 = scmp.lt.s32.totalorder %s12, 3
    %p213 = pnand %p211, %p212
    %p214 = pneg %p213
    // Predicated region
    $region41: #{conv_layer_forward.1} parent=5 // pred_check
      _
    $region42: #{conv_layer_forward.1} parent=5 // pred_check_branch
      %216 = sbr.rel (%p213) target = $region44
    $region43: #{conv_layer_forward.1} parent=5 // pred_region
      %s217 = ssub.s32 %s12, 1
      %p218 = scmp.lt.s32.totalorder %s17, 1
      %s219 = scalar_select %p218, %s17, 1
      %s220 = smul.addr %s219, 4
      %s221 = smul.addr %s220, 4
      %s222 = scalar_lea.vmem %s0, %s221
      %p223 = pneg %p38
      %p224 = pneg %p35
      %p225 = pneg %p59
      %p226 = pneg %p56
      %p227 = pneg %p80
      %p228 = pneg %p77
      %p229 = pneg %p101
      %p230 = pneg %p98
      %p231 = pneg %p122
      %p232 = pneg %p119
      %p233 = pneg %p143
      %p234 = pneg %p140
      %p235 = pneg %p169
      %p236 = pneg %p166
      %p237 = scmp.lt.s32.totalorder %s17, 1
      %s238 = scalar_select %p237, %s17, 1
      %s239 = smul.addr %s238, 3
      %s240 = smul.addr %s239, 8
      %s241 = scalar_lea.vmem %s6, %s240
      %p242 = scmp.lt.s32.totalorder %s17, 1
      %s243 = scalar_select %p242, %s17, 1
      %s244 = smul.addr %s243, 4
      %s245 = smul.addr %s244, 4
      %s246 = scalar_lea.vmem %s0, %s245
      %p247 = scmp.lt.s32.totalorder %s17, 1
      %s248 = scalar_select %p247, %s17, 1
      %s249 = smul.addr %s248, 3
      %s250 = smul.addr %s249, 8
      %s251 = scalar_lea.vmem %s6, %s250
      %v252 = vld [vmem:[%s246] sm:$0xff]
      %v253 = vld [vmem:[%s246 + $0x8] sm:$0xff]
      %v256 = vcombine.high %v252, %v252
      %v258 = vcombine.low %v252, %v252
      %v259 = vcombine.low %v253, %v253
      %260 = vrot.lane.b32.xlu0 %v258, 127
      %v261 = vpop.permute.xlu0 %260
      %262 = vrot.lane.b32.xlu0 %v252, 127
      %v263 = vpop.permute.xlu0 %262
      %264 = vrot.lane.b32.xlu0 %v259, 127
      %v265 = vpop.permute.xlu0 %264
      %266 = vrot.lane.b32.xlu0 %v253, 127
      %v267 = vpop.permute.xlu0 %266
      %vm268 = vcmask 1039360
      %v269 = vsel %vm268, %v261, %v263
      %v270 = vsel %vm268, %v263, %v265
      %v271 = vsel %vm268, %v265, %v267
      %v275 = vcombine.high %v253, %v253
      %276 = vrot.lane.b32.xlu0 %v252, 126
      %v277 = vpop.permute.xlu0 %276
      %278 = vrot.lane.b32.xlu0 %v256, 126
      %v279 = vpop.permute.xlu0 %278
      %280 = vrot.lane.b32.xlu0 %v253, 126
      %v281 = vpop.permute.xlu0 %280
      %282 = vrot.lane.b32.xlu0 %v275, 126
      %v283 = vpop.permute.xlu0 %282
      %vm284 = vcmask 1031168
      %v285 = vsel %vm284, %v277, %v279
      %v286 = vsel %vm284, %v279, %v281
      %v287 = vsel %vm284, %v281, %v283
      %291 = vrot.lane.b32.xlu0 %v258, 110
      %v292 = vpop.permute.xlu0 %291
      %293 = vrot.lane.b32.xlu0 %v252, 110
      %v294 = vpop.permute.xlu0 %293
      %295 = vrot.lane.b32.xlu0 %v259, 110
      %v296 = vpop.permute.xlu0 %295
      %297 = vrot.lane.b32.xlu0 %v253, 110
      %v298 = vpop.permute.xlu0 %297
      %vm299 = vcmask 900096
      %v300 = vsel %vm299, %v292, %v294
      %v301 = vsel %vm299, %v294, %v296
      %v302 = vsel %vm299, %v296, %v298
      %306 = vrot.lane.b32.xlu0 %v252, 109
      %v307 = vpop.permute.xlu0 %306
      %308 = vrot.lane.b32.xlu0 %v256, 109
      %v309 = vpop.permute.xlu0 %308
      %310 = vrot.lane.b32.xlu0 %v253, 109
      %v311 = vpop.permute.xlu0 %310
      %312 = vrot.lane.b32.xlu0 %v275, 109
      %v313 = vpop.permute.xlu0 %312
      %vm314 = vcmask 891904
      %v315 = vsel %vm314, %v307, %v309
      %v316 = vsel %vm314, %v309, %v311
      %v317 = vsel %vm314, %v311, %v313
      %321 = vrot.lane.b32.xlu0 %v258, 108
      %v322 = vpop.permute.xlu0 %321
      %323 = vrot.lane.b32.xlu0 %v252, 108
      %v324 = vpop.permute.xlu0 %323
      %325 = vrot.lane.b32.xlu0 %v259, 108
      %v326 = vpop.permute.xlu0 %325
      %327 = vrot.lane.b32.xlu0 %v253, 108
      %v328 = vpop.permute.xlu0 %327
      %vm329 = vcmask 883712
      %v330 = vsel %vm329, %v322, %v324
      %v331 = vsel %vm329, %v324, %v326
      %v332 = vsel %vm329, %v326, %v328
      %336 = vrot.lane.b32.xlu0 %v252, 92
      %v337 = vpop.permute.xlu0 %336
      %338 = vrot.lane.b32.xlu0 %v256, 92
      %v339 = vpop.permute.xlu0 %338
      %340 = vrot.lane.b32.xlu0 %v253, 92
      %v341 = vpop.permute.xlu0 %340
      %342 = vrot.lane.b32.xlu0 %v275, 92
      %v343 = vpop.permute.xlu0 %342
      %vm344 = vcmask 752640
      %v345 = vsel %vm344, %v337, %v339
      %v346 = vsel %vm344, %v339, %v341
      %v347 = vsel %vm344, %v341, %v343
      %351 = vrot.lane.b32.xlu0 %v258, 91
      %v352 = vpop.permute.xlu0 %351
      %353 = vrot.lane.b32.xlu0 %v252, 91
      %v354 = vpop.permute.xlu0 %353
      %355 = vrot.lane.b32.xlu0 %v259, 91
      %v356 = vpop.permute.xlu0 %355
      %357 = vrot.lane.b32.xlu0 %v253, 91
      %v358 = vpop.permute.xlu0 %357
      %vm359 = vcmask 744448
      %v360 = vsel %vm359, %v352, %v354
      %v361 = vsel %vm359, %v354, %v356
      %v362 = vsel %vm359, %v356, %v358
      %366 = vrot.lane.b32.xlu0 %v252, 90
      %v367 = vpop.permute.xlu0 %366
      %368 = vrot.lane.b32.xlu0 %v256, 90
      %v369 = vpop.permute.xlu0 %368
      %370 = vrot.lane.b32.xlu0 %v253, 90
      %v371 = vpop.permute.xlu0 %370
      %372 = vrot.lane.b32.xlu0 %v275, 90
      %v373 = vpop.permute.xlu0 %372
      %vm374 = vcmask 736256
      %v375 = vsel %vm374, %v367, %v369
      %v376 = vsel %vm374, %v369, %v371
      %v377 = vsel %vm374, %v371, %v373
      %vm378 = vcmask 1043456
      %v379 = vsel %vm378, %v252, %v269
      %v380 = vsel %vm378, %v256, %v270
      %v381 = vsel %vm378, %v253, %v271
      %v382 = vsel %vm378, %v285, %v300
      %v383 = vsel %vm378, %v286, %v301
      %v384 = vsel %vm378, %v287, %v302
      %v385 = vsel %vm378, %v315, %v330
      %v386 = vsel %vm378, %v316, %v331
      %v387 = vsel %vm378, %v317, %v332
      %v388 = vsel %vm378, %v345, %v360
      %v389 = vsel %vm378, %v346, %v361
      %v390 = vsel %vm378, %v347, %v362
      %v391 = vld [vmem:[%s1] sm:$0xff]
      %v392 = vld [vmem:[%s2] sm:$0xff]
      %394 = vset.pattern.permute.xlu0 0
      %395 = vperm.xlu0 %394, %v392
      %v396 = vpop.permute.xlu0 %395
      %vm398 = vcmask 293888
      %v400 = vsel %vm398, %v391, 0
      %v402 = vsel %vm378, %v375, 0
      %v404 = vsel %vm378, %v376, 0
      %v406 = vsel %vm378, %v377, 0
      %408 = vmatprep.subr.mxu0 %v380
      %409 = vmatpush1.msra.mxu0 %v379
      %410 = vmatprep.subr.mxu0 %v383
      %411 = vmatpush1.msra.mxu0 %v382
      %412 = vmatprep.subr.mxu0 %v386
      %413 = vmatpush1.msra.mxu0 %v385
      %414 = vmatprep.subr.mxu0 %v389
      %415 = vmatpush1.msra.mxu0 %v388
      %416 = vmatprep.subr.mxu0 %v404
      %417 = vmatpush1.msra.mxu0 %v402
      %418 = vmatprep.subr.mxu0 0.0
      %419 = vmatpush1.msra.mxu0 0.0
      %420 = vmatprep.subr.mxu0 0.0
      %421 = vmatpush1.msra.mxu0 0.0
      %422 = vmatprep.subr.mxu0 0.0
      %423 = vmatpush1.msra.mxu0 0.0
      %424 = vmatprep.subr.mxu0 0.0
      %425 = vmatpush1.msra.mxu0 0.0
      %426 = vmatprep.subr.mxu0 0.0
      %427 = vmatpush1.msra.mxu0 0.0
      %428 = vmatprep.subr.mxu0 0.0
      %429 = vmatpush1.msra.mxu0 0.0
      %430 = vmatprep.subr.mxu0 0.0
      %431 = vmatpush1.msra.mxu0 0.0
      %432 = vmatprep.subr.mxu0 0.0
      %433 = vmatpush1.msra.mxu0 0.0
      %434 = vmatprep.subr.mxu0 0.0
      %435 = vmatpush1.msra.mxu0 0.0
      %436 = vmatprep.subr.mxu0 0.0
      %437 = vmatpush1.msra.mxu0 0.0
      %438 = vmatprep.subr.mxu0 0.0
      %439 = vmatpush1.msra.mxu0 0.0
      %440 = vmatprep.subr.mxu0 0.0
      %441 = vmatpush1.msra.mxu0 0.0
      %442 = vmatprep.subr.mxu0 0.0
      %443 = vmatpush1.msra.mxu0 0.0
      %444 = vmatprep.subr.mxu0 0.0
      %445 = vmatpush1.msra.mxu0 0.0
      %446 = vmatprep.subr.mxu0 0.0
      %447 = vmatpush1.msra.mxu0 0.0
      %448 = vmatprep.subr.mxu0 0.0
      %449 = vmatpush1.msra.mxu0 0.0
      %450 = vmatprep.subr.mxu0 0.0
      %451 = vmatpush1.msra.mxu0 0.0
      %452 = vmatprep.subr.mxu0 0.0
      %453 = vmatpush1.msra.mxu0 0.0
      %454 = vmatprep.subr.mxu0 0.0
      %455 = vmatpush1.msra.mxu0 0.0
      %456 = vmatprep.subr.mxu0 0.0
      %457 = vmatpush1.msra.mxu0 0.0
      %458 = vmatprep.subr.mxu0 0.0
      %459 = vmatpush1.msra.mxu0 0.0
      %460 = vmatprep.subr.mxu0 0.0
      %461 = vmatpush1.msra.mxu0 0.0
      %462 = vmatprep.subr.mxu0 0.0
      %463 = vmatpush1.msra.mxu0 0.0
      %464 = vmatprep.subr.mxu0 0.0
      %465 = vmatpush1.msra.mxu0 0.0
      %466 = vmatprep.subr.mxu0 0.0
      %467 = vmatpush1.msra.mxu0 0.0
      %468 = vmatprep.subr.mxu0 0.0
      %469 = vmatpush1.msra.mxu0 0.0
      %470 = vmatprep.subr.mxu0 0.0
      %471 = vmatpush1.msra.mxu0 0.0
      %472 = vmatprep.mubr.f32.mxu0 0.0
      %473 = vmatmul.mubr.f32.gmra.mrb[0].mxu0 %v400
      %v474 = vpop.f32.mrb[0].mxu0
      %v475 = vadd.f32 %v396, %v474
      %v476 = vpop.f32.mrb[0].mxu0
      %v477 = vadd.f32 %v396, %v476
      %478 = vdwg.mxu0
      %479 = vmatprep.subr.mxu0 0.0
      %480 = vmatpush1.msra.mxu0 %v381
      %481 = vmatprep.subr.mxu0 0.0
      %482 = vmatpush1.msra.mxu0 %v384
      %483 = vmatprep.subr.mxu0 0.0
      %484 = vmatpush1.msra.mxu0 %v387
      %485 = vmatprep.subr.mxu0 0.0
      %486 = vmatpush1.msra.mxu0 %v390
      %487 = vmatprep.subr.mxu0 0.0
      %488 = vmatpush1.msra.mxu0 %v406
      %489 = vmatprep.subr.mxu0 0.0
      %490 = vmatpush1.msra.mxu0 0.0
      %491 = vmatprep.subr.mxu0 0.0
      %492 = vmatpush1.msra.mxu0 0.0
      %493 = vmatprep.subr.mxu0 0.0
      %494 = vmatpush1.msra.mxu0 0.0
      %495 = vmatprep.subr.mxu0 0.0
      %496 = vmatpush1.msra.mxu0 0.0
      %497 = vmatprep.subr.mxu0 0.0
      %498 = vmatpush1.msra.mxu0 0.0
      %499 = vmatprep.subr.mxu0 0.0
      %500 = vmatpush1.msra.mxu0 0.0
      %501 = vmatprep.subr.mxu0 0.0
      %502 = vmatpush1.msra.mxu0 0.0
      %503 = vmatprep.subr.mxu0 0.0
      %504 = vmatpush1.msra.mxu0 0.0
      %505 = vmatprep.subr.mxu0 0.0
      %506 = vmatpush1.msra.mxu0 0.0
      %507 = vmatprep.subr.mxu0 0.0
      %508 = vmatpush1.msra.mxu0 0.0
      %509 = vmatprep.subr.mxu0 0.0
      %510 = vmatpush1.msra.mxu0 0.0
      %511 = vmatprep.subr.mxu0 0.0
      %512 = vmatpush1.msra.mxu0 0.0
      %513 = vmatprep.subr.mxu0 0.0
      %514 = vmatpush1.msra.mxu0 0.0
      %515 = vmatprep.subr.mxu0 0.0
      %516 = vmatpush1.msra.mxu0 0.0
      %517 = vmatprep.subr.mxu0 0.0
      %518 = vmatpush1.msra.mxu0 0.0
      %519 = vmatprep.subr.mxu0 0.0
      %520 = vmatpush1.msra.mxu0 0.0
      %521 = vmatprep.subr.mxu0 0.0
      %522 = vmatpush1.msra.mxu0 0.0
      %523 = vmatprep.subr.mxu0 0.0
      %524 = vmatpush1.msra.mxu0 0.0
      %525 = vmatprep.subr.mxu0 0.0
      %526 = vmatpush1.msra.mxu0 0.0
      %527 = vmatprep.subr.mxu0 0.0
      %528 = vmatpush1.msra.mxu0 0.0
      %529 = vmatprep.subr.mxu0 0.0
      %530 = vmatpush1.msra.mxu0 0.0
      %531 = vmatprep.subr.mxu0 0.0
      %532 = vmatpush1.msra.mxu0 0.0
      %533 = vmatprep.subr.mxu0 0.0
      %534 = vmatpush1.msra.mxu0 0.0
      %535 = vmatprep.subr.mxu0 0.0
      %536 = vmatpush1.msra.mxu0 0.0
      %537 = vmatprep.subr.mxu0 0.0
      %538 = vmatpush1.msra.mxu0 0.0
      %539 = vmatprep.subr.mxu0 0.0
      %540 = vmatpush1.msra.mxu0 0.0
      %541 = vmatprep.subr.mxu0 0.0
      %542 = vmatpush1.msra.mxu0 0.0
      %543 = vmatprep.mubr.f32.mxu0 0.0
      %544 = vmatmul.mubr.f32.gmra.mrb[0].mxu0 %v400
      %v545 = vpop.f32.mrb[0].mxu0
      %v546 = vadd.f32 %v396, %v545
      %v547 = vpop.f32.mrb[0].mxu0
      %548 = vdwg.mxu0
      %v549 = vld [vmem:[%s5] sm:$0x7]
      %v551 = vlaneseq
      %v552 = vshrl.u32 %v551, 7
      %v553 = vsub.s32 0, %v552
      %v554 = vrot.slane %v549, %v553
      %v555 = vlaneseq
      %v556 = vshrl.u32 %v555, 7
      %v557 = vsub.s32 1, %v556
      %v558 = vrot.slane %v549, %v557
      %v559 = vlaneseq
      %v560 = vshrl.u32 %v559, 7
      %v561 = vsub.s32 2, %v560
      %v562 = vrot.slane %v549, %v561
      %v566 = vmul.f32 %v475, %v554
      %v567 = vmul.f32 %v477, %v558
      %v568 = vmul.f32 %v546, %v562
      %v569 = vadd.f32 %v566, %v567
      %v570 = vadd.f32 %v569, %v568
      %571 = vadd.xlane.f32.xlu0 %v570
      %v572 = vpop.xlane.xlu0 %571
      %v573 = vmul.f32 %v572, 0.00390625
      %v574 = vsub.f32 %v475, %v573
      %v575 = vsub.f32 %v477, %v573
      %v576 = vsub.f32 %v546, %v573
      %v577 = vmul.f32 %v574, %v554
      %v578 = vmul.f32 %v575, %v558
      %v579 = vmul.f32 %v576, %v562
      %v580 = vmul.f32 %v577, %v577
      %v581 = vmul.f32 %v578, %v578
      %v582 = vmul.f32 %v579, %v579
      %v583 = vadd.f32 %v580, %v581
      %v584 = vadd.f32 %v583, %v582
      %585 = vadd.xlane.f32.xlu0 %v584
      %v586 = vpop.xlane.xlu0 %585
      %v587 = vmul.f32 %v586, 0.00390625
      %v588 = vadd.f32 %v587, 1e-05
      %v589 = vrsqrt.pop %v588
      %v590 = vmul.f32 %v577, %v589
      %v591 = vmul.f32 %v578, %v589
      %v592 = vmul.f32 %v579, %v589
      %v593 = vld [vmem:[%s3] sm:$0xff]
      %595 = vset.pattern.permute.xlu0 0
      %596 = vperm.xlu0 %595, %v593
      %v597 = vpop.permute.xlu0 %596
      %v599 = vmul.f32 %v590, %v597
      %v600 = vmul.f32 %v591, %v597
      %v601 = vmul.f32 %v592, %v597
      %v602 = vld [vmem:[%s4] sm:$0xff]
      %604 = vset.pattern.permute.xlu0 0
      %605 = vperm.xlu0 %604, %v602
      %v606 = vpop.permute.xlu0 %605
      %v608 = vadd.f32 %v599, %v606
      %v609 = vadd.f32 %v600, %v606
      %v610 = vadd.f32 %v601, %v606
      %611 = vst [vmem:[%s251] sm:$0xff] %v608
      %612 = vst [vmem:[%s251 + $0x8] sm:$0xff] %v609
      %613 = vst [vmem:[%s251 + $0x10] sm:$0xff] %v610
      %p614 = scmp.lt.s32.totalorder %s17, 1
      %s615 = scalar_select %p614, %s17, 1
      %s616 = smul.addr %s615, 3
      %s617 = smul.addr %s616, 8
      %s618 = scalar_lea.vmem %s6, %s617
      // Predicated region
      $region45: #{conv_layer_forward.1} parent=43 // pred_check
        %p619 = pneg %p166
      $region46: #{conv_layer_forward.1} parent=43 // pred_check_branch
        %621 = sbr.rel (%p619) target = $region48
      $region47: #{conv_layer_forward.1} parent=43 // pred_region
        _
      $region48: #{conv_layer_forward.1} parent=43 // pred_fallthru
        _
    $region44: #{conv_layer_forward.1} parent=5 // pred_fallthru
      _
    %p622 = scmp.le.s32.totalorder 2, %s12
    // Predicated region
    $region49: #{conv_layer_forward.1} parent=5 // pred_check
      %p623 = pneg %p622
    $region50: #{conv_layer_forward.1} parent=5 // pred_check_branch
      %625 = sbr.rel (%p623) target = $region52
    $region51: #{conv_layer_forward.1} parent=5 // pred_region
      %s626 = ssub.s32 %s12, 2
      // Predicated region
      $region53: #{conv_layer_forward.1} parent=51 // pred_check
        %p627 = pneg %p172
      $region54: #{conv_layer_forward.1} parent=51 // pred_check_branch
        %629 = sbr.rel (%p627) target = $region56
      $region55: #{conv_layer_forward.1} parent=51 // pred_region
        %p630 = scmp.lt.s32.totalorder %s18, 1
        %s631 = scalar_select %p630, %s18, 1
        %s632 = smul.addr %s631, 3
        %s633 = smul.addr %s632, 8
        %s634 = scalar_lea.vmem %s6, %s633
      $region56: #{conv_layer_forward.1} parent=51 // pred_fallthru
        _
    $region52: #{conv_layer_forward.1} parent=5 // pred_fallthru
      _
  $region6: #{conv_layer_forward.1} parent=0 // loop_footer
    %s16 = sadd.s32 1, %s12
  $region7: #{conv_layer_forward.1} parent=0 // loop_footer_branch
    %11 = sbr.rel target = $region3
  $region8: #{conv_layer_forward.1} parent=0 // loop_exit
    _

</llo_original>
